<compile_context>
chip_gen: v7x
topology: tpu7x:2x2x1
jax: 0.10.0
libtpu: 0.0.40
codegen_flags: <defaults>
</compile_context>

<pallas_src>
import functools
import math

import jax
import jax.numpy as jnp
from jax import lax
from jax.experimental import pallas as pl
from jax.experimental.pallas import tpu as pltpu


def _round_up(x: int, m: int) -> int:
    return (x + m - 1) // m * m


# ---------------------------------------------------------------------------
# Path A: one-hot MXU matmul against a VMEM-resident table.
# ---------------------------------------------------------------------------
def _onehot_embed_kernel(ids_ref, emb_ref, out_ref, *, scale, d_model):
    """ids_ref: VMEM (T, 1) int32; emb_ref: VMEM (vocab_p, d_p); out: (T, d_model)."""
    t = ids_ref.shape[0]
    vocab_p = emb_ref.shape[0]
    ids = ids_ref[...]                                           # (T, 1) int32
    cols = lax.broadcasted_iota(jnp.int32, (t, vocab_p), 1)      # lane = row id
    one_hot = jnp.where(cols == ids, jnp.float32(1.0), jnp.float32(0.0))
    acc = jnp.dot(one_hot, emb_ref[...].astype(jnp.float32),
                  preferred_element_type=jnp.float32,
                  precision=lax.Precision.HIGHEST)               # one MXU call
    # Scale applied to the matmul result in vregs, fused into the store
    # (no extra read+write pass over the (T, d_model) tile).
    out_ref[...] = (acc[:, :d_model] * scale).astype(out_ref.dtype)
    # TODO(synk): when d_model < 128, pack 128 // d_model tokens per 128-lane
    # row with pltpu.roll so the VMEM stores are also unmasked (the HBM output
    # is already unpadded).


# ---------------------------------------------------------------------------
# Path B: on-chip gather from a VMEM-resident table (vocab too big for path A).
# ---------------------------------------------------------------------------
def _resident_gather_kernel(ids_ref, emb_ref, out_ref, *, tokens_per_tile, scale):
    """ids_ref: SMEM int32 (scalar-prefetched); emb_ref: VMEM-resident table."""
    base = pl.program_id(0) * tokens_per_tile

    def body(j, carry):
        tok = ids_ref[base + j]                                  # scalar SMEM read
        # Scale fused into the row copy (no trailing dense pass over the tile).
        out_ref[pl.ds(j, 1), :] = emb_ref[pl.ds(tok, 1), :] * scale
        return carry

    lax.fori_loop(0, tokens_per_tile, body, 0,
                  unroll=min(16, tokens_per_tile))
    # TODO(synk): stage 8 gathered rows in an (8, D) scratch and emit one
    # unmasked aligned store per group to relieve the vst slot (mostly v5e).


# ---------------------------------------------------------------------------
# Path C: manual overlapped row-DMA gather from HBM (table does not fit VMEM).
# ---------------------------------------------------------------------------
def _hbm_dma_gather_kernel(ids_ref, emb_hbm, out_ref, copy_sems, *,
                           tokens_per_tile, scale, n_inflight):
    base = pl.program_id(0) * tokens_per_tile

    def row_copy(j):
        tok = ids_ref[base + j]
        return pltpu.make_async_copy(
            emb_hbm.at[pl.ds(tok, 1), :],          # one table row in HBM
            out_ref.at[pl.ds(j, 1), :],            # straight into the out tile
            copy_sems.at[j % n_inflight])

    def prime(j, carry):
        row_copy(j).start()
        return carry

    lax.fori_loop(0, n_inflight, prime, 0)

    def steady(j, carry):
        row_copy(j).wait()

        @pl.when(j + n_inflight < tokens_per_tile)
        def _():
            row_copy(j + n_inflight).start()

        return carry

    lax.fori_loop(0, tokens_per_tile, steady, 0)
    out_ref[...] = out_ref[...] * scale            # one dense VPU pass per tile


def _vmem_capacity_bytes() -> int:
    """Per-core VMEM capacity; conservative 64 MiB (v7x per-TC) if unknown."""
    try:
        cap = getattr(pltpu.get_tpu_info(), "vmem_capacity_bytes", None)
        if cap:
            return int(cap)
    except Exception:
        pass
    return 64 * 1024 * 1024


def normalized_embedding(ids, emb_table, d_model, *,
                         tokens_per_tile=512,
                         onehot_vocab_limit=2048,
                         max_smem_tokens_per_call=32768,
                         dma_rows_in_flight=8):
    """ids: int [B, S]; emb_table: [vocab, d_model] -> emb_table[ids] * sqrt(d_model)."""
    B, S = ids.shape
    vocab, D = emb_table.shape
    assert D == d_model
    scale = float(math.sqrt(d_model))
    itemsize = jnp.dtype(emb_table.dtype).itemsize

    # Flatten tokens; clamp ids so a bad token can never index out of bounds.
    n_tok = B * S
    flat_ids = jnp.clip(ids.reshape(n_tok).astype(jnp.int32), 0, vocab - 1)

    # Token tile: multiple of 8 sublanes; pad the token count to whole tiles
    # (padded slots look up row 0 and are sliced away at the end).
    T = _round_up(min(tokens_per_tile, _round_up(n_tok, 8)), 8)
    n_pad = _round_up(n_tok, T)
    if n_pad != n_tok:
        flat_ids = jnp.pad(flat_ids, (0, n_pad - n_tok))
    grid = (n_pad // T,)

    # Generation-aware VMEM budget (v5e/v6e: 128 MiB, v7x: 64 MiB per core).
    vmem_cap = _vmem_capacity_bytes()
    vmem_limit = max(32 * 1024 * 1024,
                     min(int(vmem_cap * 0.8), vmem_cap - (8 << 20)))
    out_bufs = 2 * T * D * itemsize                # double-buffered output tiles
    # The constant-index table BlockSpec may still be double-buffered by the
    # pipeline, so budget 2x its footprint.
    # TODO(synk): single-buffer the resident table (pipeline_mode=pl.Buffered(1))
    # once confirmed supported; that doubles the usable resident-table budget.
    resident_budget = vmem_limit - out_bufs - 2 * T * 4 - (2 << 20)

    cparams = pltpu.CompilerParams(
        dimension_semantics=("parallel",),         # token tiles are independent
        vmem_limit_bytes=vmem_limit,
    )

    # ---------- Path A: one-hot MXU matmul, table VMEM-resident ---------------
    vocab_p = _round_up(vocab, 8)
    d_p = _round_up(D, 128)
    onehot_table_bytes = vocab_p * d_p * itemsize
    onehot_temp_bytes = T * vocab_p * 4            # in-kernel one-hot intermediate
    if (vocab <= onehot_vocab_limit
            and 2 * onehot_table_bytes + onehot_temp_bytes <= resident_budget):
        table = emb_table
        if (vocab_p, d_p) != (vocab, D):
            table = jnp.pad(emb_table, ((0, vocab_p - vocab), (0, d_p - D)))
        kernel = functools.partial(_onehot_embed_kernel, scale=scale, d_model=D)
        out_flat = pl.pallas_call(
            kernel,
            out_shape=jax.ShapeDtypeStruct((n_pad, D), emb_table.dtype),
            grid=grid,
            in_specs=[
                pl.BlockSpec((T, 1), lambda t: (t, 0)),            # token ids
                pl.BlockSpec((vocab_p, d_p), lambda t: (0, 0)),    # resident table
            ],
            out_specs=pl.BlockSpec((T, D), lambda t: (t, 0)),
            compiler_params=cparams,
            cost_estimate=pl.CostEstimate(
                flops=2 * n_pad * vocab_p * d_p,
                transcendentals=0,
                bytes_accessed=(onehot_table_bytes + n_pad * 4
                                + n_pad * D * itemsize),
            ),
        )(flat_ids.reshape(n_pad, 1), table)
        return out_flat[:n_tok].reshape(B, S, D)

    # Paths B/C scalar-prefetch token ids into SMEM; chunk the token axis so
    # the SMEM id footprint stays bounded for very long batches.
    tokens_per_call = max(T, (max_smem_tokens_per_call // T) * T)
    table_bytes = vocab * D * itemsize
    resident = 2 * table_bytes <= resident_budget

    def call_chunk(ids_chunk):
        n_chunk = ids_chunk.shape[0]               # always a multiple of T
        chunk_out = jax.ShapeDtypeStruct((n_chunk, D), emb_table.dtype)
        if resident:
            # ----- Path B: on-chip gather from the VMEM-resident table --------
            kernel = functools.partial(
                _resident_gather_kernel, tokens_per_tile=T, scale=scale)
            return pl.pallas_call(
                kernel,
                out_shape=chunk_out,
                grid_spec=pltpu.PrefetchScalarGridSpec(
                    num_scalar_prefetch=1,
                    grid=(n_chunk // T,),
                    in_specs=[pl.BlockSpec((vocab, D), lambda t, ids: (0, 0))],
                    out_specs=pl.BlockSpec((T, D), lambda t, ids: (t, 0)),
                ),
                compiler_params=cparams,
                cost_estimate=pl.CostEstimate(
                    flops=n_chunk * D, transcendentals=0,
                    bytes_accessed=table_bytes + n_chunk * (D * itemsize + 4)),
            )(ids_chunk, emb_table)
        # ----- Path C: overlapped row-DMA gather, table stays in HBM ----------
        n_inflight = max(1, min(dma_rows_in_flight, T))
        kernel = functools.partial(
            _hbm_dma_gather_kernel, tokens_per_tile=T, scale=scale,
            n_inflight=n_inflight)
        return pl.pallas_call(
            kernel,
            out_shape=chunk_out,
            grid_spec=pltpu.PrefetchScalarGridSpec(
                num_scalar_prefetch=1,
                grid=(n_chunk // T,),
                in_specs=[pl.BlockSpec(memory_space=pl.ANY)],   # raw HBM table
                out_specs=pl.BlockSpec((T, D), lambda t, ids: (t, 0)),
                scratch_shapes=[pltpu.SemaphoreType.DMA((n_inflight,))],
            ),
            compiler_params=cparams,
            cost_estimate=pl.CostEstimate(
                flops=n_chunk * D, transcendentals=0,
                bytes_accessed=2 * n_chunk * D * itemsize + n_chunk * 4),
        )(ids_chunk, emb_table)

    pieces = [call_chunk(flat_ids[s:s + tokens_per_call])
              for s in range(0, n_pad, tokens_per_call)]
    out_flat = pieces[0] if len(pieces) == 1 else jnp.concatenate(pieces, 0)
    return out_flat[:n_tok].reshape(B, S, D)


def init_embedding_table(key, vocab, d_model, blank_id=0):
    """nn.Embedding default init N(0, 1); the padding row (blank_id) is zeroed."""
    w = jax.random.normal(key, (vocab, d_model), dtype=jnp.float32)
    return w.at[blank_id].set(0.0)


if __name__ == "__main__":
    key = jax.random.PRNGKey(0)
    k_w, k_ids = jax.random.split(key)

    vocab, d_model = 40, 32
    batch, seq = 2, 8

    emb_table = init_embedding_table(k_w, vocab, d_model, blank_id=0)
    # Round the test table to bf16-representable values so the reference check
    # stays exact no matter how many bf16 passes the MXU uses to emulate the
    # f32 one-hot matmul (the kernel itself requests Precision.HIGHEST).
    emb_table = emb_table.astype(jnp.bfloat16).astype(jnp.float32)

    ids = jax.random.randint(k_ids, (batch, seq), 0, vocab, dtype=jnp.int32)

    out = normalized_embedding(ids, emb_table, d_model)
    out = jax.block_until_ready(out)

    # Reference in plain JAX.
    ref = emb_table[ids] * math.sqrt(d_model)
    assert out.shape == (batch, seq, d_model)
    assert jnp.allclose(out, ref, atol=1e-5), "mismatch vs reference"

    print("KERNEL_OK")
</pallas_src>

<mosaic_0001>
module attributes {stable_mosaic.version = 11 : i64} {
  func.func @_onehot_embed_kernel(%arg0: i32, %arg1: memref<16x1xi32, #tpu.memory_space<vmem>>, %arg2: memref<40x128xf32, #tpu.memory_space<vmem>>, %arg3: memref<16x32xf32, #tpu.memory_space<vmem>>) attributes {dimension_semantics = [#tpu.dimension_semantics<parallel>], iteration_bounds = array<i64: 1>, scalar_prefetch = 0 : i64, scratch_operands = 0 : i64, tpu.core_type = #tpu.core_type<tc>, window_params = [{transform_indices = @transform_0, window_bounds = array<i64: 16, 1>}, {pipeline_mode = #tpu.pipeline_mode<synchronous>, transform_indices = @transform_1, window_bounds = array<i64: 40, 128>}, {transform_indices = @transform_2, window_bounds = array<i64: 16, 32>}]} {
    %c0 = arith.constant 0 : index
    %c0_0 = arith.constant 0 : index
    %0 = vector.load %arg1[%c0, %c0_0] : memref<16x1xi32, #tpu.memory_space<vmem>>, vector<16x1xi32>
    %1 = tpu.iota {dimensions = array<i32: 1>} : vector<16x40xi32>
    %2 = vector.broadcast %0 : vector<16x1xi32> to vector<16x40xi32>
    %3 = arith.cmpi eq, %1, %2 : vector<16x40xi32>
    %cst = arith.constant 1.000000e+00 : f32
    %cst_1 = arith.constant 0.000000e+00 : f32
    %4 = vector.broadcast %cst : f32 to vector<16x40xf32>
    %5 = vector.broadcast %cst_1 : f32 to vector<16x40xf32>
    %6 = arith.select %3, %4, %5 : vector<16x40xi1>, vector<16x40xf32>
    %c0_2 = arith.constant 0 : index
    %c0_3 = arith.constant 0 : index
    %7 = vector.load %arg2[%c0_2, %c0_3] : memref<40x128xf32, #tpu.memory_space<vmem>>, vector<40x128xf32>
    %cst_4 = arith.constant dense<0.000000e+00> : vector<16x128xf32>
    %8 = tpu.matmul %6, %7, %cst_4 {dimension_numbers = #tpu.dot_dimension_numbers<[1], [0], [0], [1], [0, 0, 1, 1], [], []>, precision = #tpu.contract_precision<fp32>} : vector<16x40xf32>, vector<40x128xf32>, vector<16x128xf32> -> vector<16x128xf32>
    %9 = vector.extract_strided_slice %8 {offsets = [0, 0], sizes = [16, 32], strides = [1, 1]} : vector<16x128xf32> to vector<16x32xf32>
    %cst_5 = arith.constant 5.65685415 : f32
    %10 = vector.broadcast %cst_5 : f32 to vector<16x32xf32>
    %11 = arith.mulf %9, %10 : vector<16x32xf32>
    %c0_6 = arith.constant 0 : index
    %c0_7 = arith.constant 0 : index
    %12 = vector.load %arg3[%c0_6, %c0_7] : memref<16x32xf32, #tpu.memory_space<vmem>>, vector<16x32xf32>
    tpu.vector_store %arg3[%c0_6, %c0_7], %11 {strides = array<i32>} : memref<16x32xf32, #tpu.memory_space<vmem>>, vector<16x32xf32>,
    return
  }
  func.func @transform_0(%arg0: i32) -> (i32, i32) {
    %c0_i32 = arith.constant 0 : i32
    %c0_i32_0 = arith.constant 0 : i32
    return %arg0, %c0_i32 : i32, i32
  }
  func.func @transform_1(%arg0: i32) -> (i32, i32) {
    %c0_i32 = arith.constant 0 : i32
    %c0_i32_0 = arith.constant 0 : i32
    %c0_i32_1 = arith.constant 0 : i32
    return %c0_i32, %c0_i32_0 : i32, i32
  }
  func.func @transform_2(%arg0: i32) -> (i32, i32) {
    %c0_i32 = arith.constant 0 : i32
    %c0_i32_0 = arith.constant 0 : i32
    return %arg0, %c0_i32 : i32, i32
  }
}

</mosaic_0001>

<llo_original>
// kernel: tpu_custom_call.1
$region0: #{tpu_custom_call.1}
  #allocation0 [shape = 'u32[]', space=smem, size = 0x4, offset = 0x4, fixed_abs, tag = 'smem constant byte address 0x4 - core index']
  #allocation1 [shape = 'u32[144,128]{1,0:T(1,128)}', space=vmem, size = 0x12000, scoped, tag = 'internal scratch']
  %s0 = inlined_call_operand.vmem [shape: s32[16,1], index: 0, kind: input, shape index: {}]
  %s1 = inlined_call_operand.hbm [shape: f32[40,128], index: 1, kind: input, shape index: {}]
  %s2 = inlined_call_operand.hbm [shape: f32[16,32], index: 2, kind: output, shape index: {}]
  %s3 = sld [smem:[#allocation0]]
  $region22: #{tpu_custom_call.1} parent=0
    _
  %s5 = ssub.s32 1, %s3
  %s6 = scalar_select 0, %s5, %s3
  $region1: #{tpu_custom_call.1} parent=0
    #allocation2 [shape = 'u8[20480]{0}', space=vmem, size = 0x5000, scoped, tag = 'input window, operand 1, single buffered']
    #allocation3 [shape = 's32[1]{0}', space=sflag, size = 0x4, scoped, tag = 'scoped memory for tpu_custom_call.1']
    #allocation4 [shape = 's32[1]{0}', space=sflag, size = 0x4, scoped, tag = 'scoped memory for tpu_custom_call.1']
    #allocation5 [shape = 'u8[8192]{0}', space=vmem, size = 0x2000, scoped, tag = 'output window, operand 0, single buffered']
    %7 = vsyncpa [#allocation3], 0
    %8 = vsyncpa [#allocation4], 0
    // Predicated region
    $region2: #{tpu_custom_call.1} parent=1 // pred_check
      _
    $region3: #{tpu_custom_call.1} parent=1 // pred_check_branch
      %10 = sbr.rel (0) target = $region5
    $region4: #{tpu_custom_call.1} parent=1 // pred_region
      _
    $region5: #{tpu_custom_call.1} parent=1 // pred_fallthru
      _
    // Predicated region
    $region6: #{tpu_custom_call.1} parent=1 // pred_check
      _
    $region7: #{tpu_custom_call.1} parent=1 // pred_check_branch
      %12 = sbr.rel (0) target = $region9
    $region8: #{tpu_custom_call.1} parent=1 // pred_region
      %s14 = ssub.s32 640, 640
      %15 = vsyncadd [#allocation3], %s14
      %s16 = sshll.u32 [#allocation2], 4
      %s17 = int_to_ptr.vmem [resolvable:$true] %s16
      %22 = dma.hbm_to_vmem [thread:$0]  %s1, 640, %s17, [#allocation3], 128, 128, 8
    $region9: #{tpu_custom_call.1} parent=1 // pred_fallthru
      _
    // Predicated region
    $region10: #{tpu_custom_call.1} parent=1 // pred_check
      _
    $region11: #{tpu_custom_call.1} parent=1 // pred_check_branch
      %24 = sbr.rel (0) target = $region13
    $region12: #{tpu_custom_call.1} parent=1 // pred_region
      %25 = dma.done [#allocation3], 640
    $region13: #{tpu_custom_call.1} parent=1 // pred_fallthru
      _
    %v26 = vld [vmem:[%s0] sm:$0xff]
    %v27 = vld [vmem:[%s0 + $0x8] sm:$0xff]
    %v28 = vlaneseq
    %v29 = vand.u32 %v28, 127
    %30 = vset.pattern.permute.xlu0 0
    %31 = vperm.xlu0 %30, %v26
    %v32 = vpop.permute.xlu0 %31
    %33 = vset.pattern.permute.xlu0 0
    %34 = vperm.xlu0 %33, %v27
    %v35 = vpop.permute.xlu0 %34
    %vm36 = vcmp.eq.s32.totalorder %v29, %v32
    %vm37 = vcmp.eq.s32.totalorder %v29, %v35
    %v38 = vsel %vm36, 1.0, 0.0
    %v39 = vsel %vm37, 1.0, 0.0
    %v40 = vld [vmem:[#allocation2] sm:$0xff]
    %v41 = vld [vmem:[#allocation2 + $0x8] sm:$0xff]
    %v42 = vld [vmem:[#allocation2 + $0x10] sm:$0xff]
    %v43 = vld [vmem:[#allocation2 + $0x18] sm:$0xff]
    %v44 = vld [vmem:[#allocation2 + $0x20] sm:$0xff]
    %vm45 = vcmask 326656
    %v47 = vsel %vm45, %v38, 0
    %v50 = vsel %vm45, %v39, 0
    %52 = vmatprep.subr.mxu0 0.0
    %v53 = vand.u32 %v40, 4294901760
    %54 = vmatpush1.msra.mxu0 %v53
    %55 = vmatprep.subr.mxu0 0.0
    %v56 = vand.u32 %v41, 4294901760
    %57 = vmatpush1.msra.mxu0 %v56
    %58 = vmatprep.subr.mxu0 0.0
    %v59 = vand.u32 %v42, 4294901760
    %60 = vmatpush1.msra.mxu0 %v59
    %61 = vmatprep.subr.mxu0 0.0
    %v62 = vand.u32 %v43, 4294901760
    %63 = vmatpush1.msra.mxu0 %v62
    %64 = vmatprep.subr.mxu0 0.0
    %v65 = vand.u32 %v44, 4294901760
    %66 = vmatpush1.msra.mxu0 %v65
    %67 = vmatprep.subr.mxu0 0.0
    %68 = vmatpush1.msra.mxu0 0.0
    %69 = vmatprep.subr.mxu0 0.0
    %70 = vmatpush1.msra.mxu0 0.0
    %71 = vmatprep.subr.mxu0 0.0
    %72 = vmatpush1.msra.mxu0 0.0
    %73 = vmatprep.subr.mxu0 0.0
    %74 = vmatpush1.msra.mxu0 0.0
    %75 = vmatprep.subr.mxu0 0.0
    %76 = vmatpush1.msra.mxu0 0.0
    %77 = vmatprep.subr.mxu0 0.0
    %78 = vmatpush1.msra.mxu0 0.0
    %79 = vmatprep.subr.mxu0 0.0
    %80 = vmatpush1.msra.mxu0 0.0
    %81 = vmatprep.subr.mxu0 0.0
    %82 = vmatpush1.msra.mxu0 0.0
    %83 = vmatprep.subr.mxu0 0.0
    %84 = vmatpush1.msra.mxu0 0.0
    %85 = vmatprep.subr.mxu0 0.0
    %86 = vmatpush1.msra.mxu0 0.0
    %87 = vmatprep.subr.mxu0 0.0
    %88 = vmatpush1.msra.mxu0 0.0
    %89 = vmatprep.subr.mxu0 0.0
    %90 = vmatpush1.msra.mxu0 0.0
    %91 = vmatprep.subr.mxu0 0.0
    %92 = vmatpush1.msra.mxu0 0.0
    %93 = vmatprep.subr.mxu0 0.0
    %94 = vmatpush1.msra.mxu0 0.0
    %95 = vmatprep.subr.mxu0 0.0
    %96 = vmatpush1.msra.mxu0 0.0
    %97 = vmatprep.subr.mxu0 0.0
    %98 = vmatpush1.msra.mxu0 0.0
    %99 = vmatprep.subr.mxu0 0.0
    %100 = vmatpush1.msra.mxu0 0.0
    %101 = vmatprep.subr.mxu0 0.0
    %102 = vmatpush1.msra.mxu0 0.0
    %103 = vmatprep.subr.mxu0 0.0
    %104 = vmatpush1.msra.mxu0 0.0
    %105 = vmatprep.subr.mxu0 0.0
    %106 = vmatpush1.msra.mxu0 0.0
    %107 = vmatprep.subr.mxu0 0.0
    %108 = vmatpush1.msra.mxu0 0.0
    %109 = vmatprep.subr.mxu0 0.0
    %110 = vmatpush1.msra.mxu0 0.0
    %111 = vmatprep.subr.mxu0 0.0
    %112 = vmatpush1.msra.mxu0 0.0
    %113 = vmatprep.subr.mxu0 0.0
    %114 = vmatpush1.msra.mxu0 0.0
    %115 = vmatprep.subr.mxu0 0.0
    %116 = vmatpush1.msra.mxu0 0.0
    %117 = vmatprep.subr.mxu0 0.0
    %118 = vmatpush1.msra.mxu0 0.0
    %119 = vmatprep.subr.mxu0 0.0
    %120 = vmatpush1.msra.mxu0 0.0
    %121 = vmatprep.mubr.f32.mxu0 0.0
    %v122 = vand.u32 %v47, 4294901760
    %v123 = vsub.f32 %v47, %v122
    %v124 = vand.u32 %v123, 4294901760
    %v125 = vsub.f32 %v123, %v124
    %v126 = vand.u32 %v125, 4294901760
    %127 = vmatmul.mubr.f32.gmra.mrb[0].mxu0 %v126
    %v128 = vpop.f32.mrb[0].mxu0
    %v129 = vadd.f32 0.0, %v128
    %v130 = vpop.f32.mrb[0].mxu0
    %131 = vmatprep.mubr.f32.mxu0 0.0
    %v132 = vand.u32 %v50, 4294901760
    %v133 = vsub.f32 %v50, %v132
    %v134 = vand.u32 %v133, 4294901760
    %v135 = vsub.f32 %v133, %v134
    %v136 = vand.u32 %v135, 4294901760
    %137 = vmatmul.mubr.f32.gmra.mrb[0].mxu0 %v136
    %v138 = vpop.f32.mrb[0].mxu0
    %v139 = vadd.f32 0.0, %v138
    %v140 = vpop.f32.mrb[0].mxu0
    %141 = vdwg.mxu0
    %142 = vmatprep.subr.mxu0 0.0
    %v143 = vand.u32 %v40, 4294901760
    %v144 = vsub.f32 %v40, %v143
    %v145 = vand.u32 %v144, 4294901760
    %v146 = vsub.f32 %v144, %v145
    %v147 = vand.u32 %v146, 4294901760
    %148 = vmatpush1.msra.mxu0 %v147
    %149 = vmatprep.subr.mxu0 0.0
    %v150 = vand.u32 %v41, 4294901760
    %v151 = vsub.f32 %v41, %v150
    %v152 = vand.u32 %v151, 4294901760
    %v153 = vsub.f32 %v151, %v152
    %v154 = vand.u32 %v153, 4294901760
    %155 = vmatpush1.msra.mxu0 %v154
    %156 = vmatprep.subr.mxu0 0.0
    %v157 = vand.u32 %v42, 4294901760
    %v158 = vsub.f32 %v42, %v157
    %v159 = vand.u32 %v158, 4294901760
    %v160 = vsub.f32 %v158, %v159
    %v161 = vand.u32 %v160, 4294901760
    %162 = vmatpush1.msra.mxu0 %v161
    %163 = vmatprep.subr.mxu0 0.0
    %v164 = vand.u32 %v43, 4294901760
    %v165 = vsub.f32 %v43, %v164
    %v166 = vand.u32 %v165, 4294901760
    %v167 = vsub.f32 %v165, %v166
    %v168 = vand.u32 %v167, 4294901760
    %169 = vmatpush1.msra.mxu0 %v168
    %170 = vmatprep.subr.mxu0 0.0
    %v171 = vand.u32 %v44, 4294901760
    %v172 = vsub.f32 %v44, %v171
    %v173 = vand.u32 %v172, 4294901760
    %v174 = vsub.f32 %v172, %v173
    %v175 = vand.u32 %v174, 4294901760
    %176 = vmatpush1.msra.mxu0 %v175
    %177 = vmatprep.subr.mxu0 0.0
    %178 = vmatpush1.msra.mxu0 0.0
    %179 = vmatprep.subr.mxu0 0.0
    %180 = vmatpush1.msra.mxu0 0.0
    %181 = vmatprep.subr.mxu0 0.0
    %182 = vmatpush1.msra.mxu0 0.0
    %183 = vmatprep.subr.mxu0 0.0
    %184 = vmatpush1.msra.mxu0 0.0
    %185 = vmatprep.subr.mxu0 0.0
    %186 = vmatpush1.msra.mxu0 0.0
    %187 = vmatprep.subr.mxu0 0.0
    %188 = vmatpush1.msra.mxu0 0.0
    %189 = vmatprep.subr.mxu0 0.0
    %190 = vmatpush1.msra.mxu0 0.0
    %191 = vmatprep.subr.mxu0 0.0
    %192 = vmatpush1.msra.mxu0 0.0
    %193 = vmatprep.subr.mxu0 0.0
    %194 = vmatpush1.msra.mxu0 0.0
    %195 = vmatprep.subr.mxu0 0.0
    %196 = vmatpush1.msra.mxu0 0.0
    %197 = vmatprep.subr.mxu0 0.0
    %198 = vmatpush1.msra.mxu0 0.0
    %199 = vmatprep.subr.mxu0 0.0
    %200 = vmatpush1.msra.mxu0 0.0
    %201 = vmatprep.subr.mxu0 0.0
    %202 = vmatpush1.msra.mxu0 0.0
    %203 = vmatprep.subr.mxu0 0.0
    %204 = vmatpush1.msra.mxu0 0.0
    %205 = vmatprep.subr.mxu0 0.0
    %206 = vmatpush1.msra.mxu0 0.0
    %207 = vmatprep.subr.mxu0 0.0
    %208 = vmatpush1.msra.mxu0 0.0
    %209 = vmatprep.subr.mxu0 0.0
    %210 = vmatpush1.msra.mxu0 0.0
    %211 = vmatprep.subr.mxu0 0.0
    %212 = vmatpush1.msra.mxu0 0.0
    %213 = vmatprep.subr.mxu0 0.0
    %214 = vmatpush1.msra.mxu0 0.0
    %215 = vmatprep.subr.mxu0 0.0
    %216 = vmatpush1.msra.mxu0 0.0
    %217 = vmatprep.subr.mxu0 0.0
    %218 = vmatpush1.msra.mxu0 0.0
    %219 = vmatprep.subr.mxu0 0.0
    %220 = vmatpush1.msra.mxu0 0.0
    %221 = vmatprep.subr.mxu0 0.0
    %222 = vmatpush1.msra.mxu0 0.0
    %223 = vmatprep.subr.mxu0 0.0
    %224 = vmatpush1.msra.mxu0 0.0
    %225 = vmatprep.subr.mxu0 0.0
    %226 = vmatpush1.msra.mxu0 0.0
    %227 = vmatprep.subr.mxu0 0.0
    %228 = vmatpush1.msra.mxu0 0.0
    %229 = vmatprep.subr.mxu0 0.0
    %230 = vmatpush1.msra.mxu0 0.0
    %231 = vmatprep.mubr.f32.mxu0 0.0
    %v232 = vand.u32 %v47, 4294901760
    %233 = vmatmul.mubr.f32.gmra.mrb[0].mxu0 %v232
    %v234 = vpop.f32.mrb[0].mxu0
    %v235 = vadd.f32 %v129, %v234
    %v236 = vpop.f32.mrb[0].mxu0
    %237 = vmatprep.mubr.f32.mxu0 0.0
    %v238 = vand.u32 %v50, 4294901760
    %239 = vmatmul.mubr.f32.gmra.mrb[0].mxu0 %v238
    %v240 = vpop.f32.mrb[0].mxu0
    %v241 = vadd.f32 %v139, %v240
    %v242 = vpop.f32.mrb[0].mxu0
    %243 = vdwg.mxu0
    %244 = vmatprep.subr.mxu0 0.0
    %v245 = vand.u32 %v40, 4294901760
    %v246 = vsub.f32 %v40, %v245
    %247 = vmatpush1.msra.mxu0 %v246
    %248 = vmatprep.subr.mxu0 0.0
    %v249 = vand.u32 %v41, 4294901760
    %v250 = vsub.f32 %v41, %v249
    %251 = vmatpush1.msra.mxu0 %v250
    %252 = vmatprep.subr.mxu0 0.0
    %v253 = vand.u32 %v42, 4294901760
    %v254 = vsub.f32 %v42, %v253
    %255 = vmatpush1.msra.mxu0 %v254
    %256 = vmatprep.subr.mxu0 0.0
    %v257 = vand.u32 %v43, 4294901760
    %v258 = vsub.f32 %v43, %v257
    %259 = vmatpush1.msra.mxu0 %v258
    %260 = vmatprep.subr.mxu0 0.0
    %v261 = vand.u32 %v44, 4294901760
    %v262 = vsub.f32 %v44, %v261
    %263 = vmatpush1.msra.mxu0 %v262
    %264 = vmatprep.subr.mxu0 0.0
    %265 = vmatpush1.msra.mxu0 0.0
    %266 = vmatprep.subr.mxu0 0.0
    %267 = vmatpush1.msra.mxu0 0.0
    %268 = vmatprep.subr.mxu0 0.0
    %269 = vmatpush1.msra.mxu0 0.0
    %270 = vmatprep.subr.mxu0 0.0
    %271 = vmatpush1.msra.mxu0 0.0
    %272 = vmatprep.subr.mxu0 0.0
    %273 = vmatpush1.msra.mxu0 0.0
    %274 = vmatprep.subr.mxu0 0.0
    %275 = vmatpush1.msra.mxu0 0.0
    %276 = vmatprep.subr.mxu0 0.0
    %277 = vmatpush1.msra.mxu0 0.0
    %278 = vmatprep.subr.mxu0 0.0
    %279 = vmatpush1.msra.mxu0 0.0
    %280 = vmatprep.subr.mxu0 0.0
    %281 = vmatpush1.msra.mxu0 0.0
    %282 = vmatprep.subr.mxu0 0.0
    %283 = vmatpush1.msra.mxu0 0.0
    %284 = vmatprep.subr.mxu0 0.0
    %285 = vmatpush1.msra.mxu0 0.0
    %286 = vmatprep.subr.mxu0 0.0
    %287 = vmatpush1.msra.mxu0 0.0
    %288 = vmatprep.subr.mxu0 0.0
    %289 = vmatpush1.msra.mxu0 0.0
    %290 = vmatprep.subr.mxu0 0.0
    %291 = vmatpush1.msra.mxu0 0.0
    %292 = vmatprep.subr.mxu0 0.0
    %293 = vmatpush1.msra.mxu0 0.0
    %294 = vmatprep.subr.mxu0 0.0
    %295 = vmatpush1.msra.mxu0 0.0
    %296 = vmatprep.subr.mxu0 0.0
    %297 = vmatpush1.msra.mxu0 0.0
    %298 = vmatprep.subr.mxu0 0.0
    %299 = vmatpush1.msra.mxu0 0.0
    %300 = vmatprep.subr.mxu0 0.0
    %301 = vmatpush1.msra.mxu0 0.0
    %302 = vmatprep.subr.mxu0 0.0
    %303 = vmatpush1.msra.mxu0 0.0
    %304 = vmatprep.subr.mxu0 0.0
    %305 = vmatpush1.msra.mxu0 0.0
    %306 = vmatprep.subr.mxu0 0.0
    %307 = vmatpush1.msra.mxu0 0.0
    %308 = vmatprep.subr.mxu0 0.0
    %309 = vmatpush1.msra.mxu0 0.0
    %310 = vmatprep.subr.mxu0 0.0
    %311 = vmatpush1.msra.mxu0 0.0
    %312 = vmatprep.subr.mxu0 0.0
    %313 = vmatpush1.msra.mxu0 0.0
    %314 = vmatprep.subr.mxu0 0.0
    %315 = vmatpush1.msra.mxu0 0.0
    %316 = vmatprep.subr.mxu0 0.0
    %317 = vmatpush1.msra.mxu0 0.0
    %318 = vmatprep.mubr.f32.mxu0 0.0
    %v319 = vand.u32 %v47, 4294901760
    %v320 = vsub.f32 %v47, %v319
    %321 = vmatmul.mubr.f32.gmra.mrb[0].mxu0 %v320
    %v322 = vpop.f32.mrb[0].mxu0
    %v323 = vadd.f32 %v235, %v322
    %v324 = vpop.f32.mrb[0].mxu0
    %325 = vmatprep.mubr.f32.mxu0 0.0
    %v326 = vand.u32 %v50, 4294901760
    %v327 = vsub.f32 %v50, %v326
    %328 = vmatmul.mubr.f32.gmra.mrb[0].mxu0 %v327
    %v329 = vpop.f32.mrb[0].mxu0
    %v330 = vadd.f32 %v241, %v329
    %v331 = vpop.f32.mrb[0].mxu0
    %332 = vdwg.mxu0
    %333 = vmatprep.subr.mxu0 0.0
    %v334 = vand.u32 %v40, 4294901760
    %335 = vmatpush1.msra.mxu0 %v334
    %336 = vmatprep.subr.mxu0 0.0
    %v337 = vand.u32 %v41, 4294901760
    %338 = vmatpush1.msra.mxu0 %v337
    %339 = vmatprep.subr.mxu0 0.0
    %v340 = vand.u32 %v42, 4294901760
    %341 = vmatpush1.msra.mxu0 %v340
    %342 = vmatprep.subr.mxu0 0.0
    %v343 = vand.u32 %v43, 4294901760
    %344 = vmatpush1.msra.mxu0 %v343
    %345 = vmatprep.subr.mxu0 0.0
    %v346 = vand.u32 %v44, 4294901760
    %347 = vmatpush1.msra.mxu0 %v346
    %348 = vmatprep.subr.mxu0 0.0
    %349 = vmatpush1.msra.mxu0 0.0
    %350 = vmatprep.subr.mxu0 0.0
    %351 = vmatpush1.msra.mxu0 0.0
    %352 = vmatprep.subr.mxu0 0.0
    %353 = vmatpush1.msra.mxu0 0.0
    %354 = vmatprep.subr.mxu0 0.0
    %355 = vmatpush1.msra.mxu0 0.0
    %356 = vmatprep.subr.mxu0 0.0
    %357 = vmatpush1.msra.mxu0 0.0
    %358 = vmatprep.subr.mxu0 0.0
    %359 = vmatpush1.msra.mxu0 0.0
    %360 = vmatprep.subr.mxu0 0.0
    %361 = vmatpush1.msra.mxu0 0.0
    %362 = vmatprep.subr.mxu0 0.0
    %363 = vmatpush1.msra.mxu0 0.0
    %364 = vmatprep.subr.mxu0 0.0
    %365 = vmatpush1.msra.mxu0 0.0
    %366 = vmatprep.subr.mxu0 0.0
    %367 = vmatpush1.msra.mxu0 0.0
    %368 = vmatprep.subr.mxu0 0.0
    %369 = vmatpush1.msra.mxu0 0.0
    %370 = vmatprep.subr.mxu0 0.0
    %371 = vmatpush1.msra.mxu0 0.0
    %372 = vmatprep.subr.mxu0 0.0
    %373 = vmatpush1.msra.mxu0 0.0
    %374 = vmatprep.subr.mxu0 0.0
    %375 = vmatpush1.msra.mxu0 0.0
    %376 = vmatprep.subr.mxu0 0.0
    %377 = vmatpush1.msra.mxu0 0.0
    %378 = vmatprep.subr.mxu0 0.0
    %379 = vmatpush1.msra.mxu0 0.0
    %380 = vmatprep.subr.mxu0 0.0
    %381 = vmatpush1.msra.mxu0 0.0
    %382 = vmatprep.subr.mxu0 0.0
    %383 = vmatpush1.msra.mxu0 0.0
    %384 = vmatprep.subr.mxu0 0.0
    %385 = vmatpush1.msra.mxu0 0.0
    %386 = vmatprep.subr.mxu0 0.0
    %387 = vmatpush1.msra.mxu0 0.0
    %388 = vmatprep.subr.mxu0 0.0
    %389 = vmatpush1.msra.mxu0 0.0
    %390 = vmatprep.subr.mxu0 0.0
    %391 = vmatpush1.msra.mxu0 0.0
    %392 = vmatprep.subr.mxu0 0.0
    %393 = vmatpush1.msra.mxu0 0.0
    %394 = vmatprep.subr.mxu0 0.0
    %395 = vmatpush1.msra.mxu0 0.0
    %396 = vmatprep.subr.mxu0 0.0
    %397 = vmatpush1.msra.mxu0 0.0
    %398 = vmatprep.subr.mxu0 0.0
    %399 = vmatpush1.msra.mxu0 0.0
    %400 = vmatprep.subr.mxu0 0.0
    %401 = vmatpush1.msra.mxu0 0.0
    %402 = vmatprep.mubr.f32.mxu0 0.0
    %v403 = vand.u32 %v47, 4294901760
    %v404 = vsub.f32 %v47, %v403
    %v405 = vand.u32 %v404, 4294901760
    %406 = vmatmul.mubr.f32.gmra.mrb[0].mxu0 %v405
    %v407 = vpop.f32.mrb[0].mxu0
    %v408 = vadd.f32 %v323, %v407
    %v409 = vpop.f32.mrb[0].mxu0
    %410 = vmatprep.mubr.f32.mxu0 0.0
    %v411 = vand.u32 %v50, 4294901760
    %v412 = vsub.f32 %v50, %v411
    %v413 = vand.u32 %v412, 4294901760
    %414 = vmatmul.mubr.f32.gmra.mrb[0].mxu0 %v413
    %v415 = vpop.f32.mrb[0].mxu0
    %v416 = vadd.f32 %v330, %v415
    %v417 = vpop.f32.mrb[0].mxu0
    %418 = vdwg.mxu0
    %419 = vmatprep.subr.mxu0 0.0
    %v420 = vand.u32 %v40, 4294901760
    %v421 = vsub.f32 %v40, %v420
    %v422 = vand.u32 %v421, 4294901760
    %423 = vmatpush1.msra.mxu0 %v422
    %424 = vmatprep.subr.mxu0 0.0
    %v425 = vand.u32 %v41, 4294901760
    %v426 = vsub.f32 %v41, %v425
    %v427 = vand.u32 %v426, 4294901760
    %428 = vmatpush1.msra.mxu0 %v427
    %429 = vmatprep.subr.mxu0 0.0
    %v430 = vand.u32 %v42, 4294901760
    %v431 = vsub.f32 %v42, %v430
    %v432 = vand.u32 %v431, 4294901760
    %433 = vmatpush1.msra.mxu0 %v432
    %434 = vmatprep.subr.mxu0 0.0
    %v435 = vand.u32 %v43, 4294901760
    %v436 = vsub.f32 %v43, %v435
    %v437 = vand.u32 %v436, 4294901760
    %438 = vmatpush1.msra.mxu0 %v437
    %439 = vmatprep.subr.mxu0 0.0
    %v440 = vand.u32 %v44, 4294901760
    %v441 = vsub.f32 %v44, %v440
    %v442 = vand.u32 %v441, 4294901760
    %443 = vmatpush1.msra.mxu0 %v442
    %444 = vmatprep.subr.mxu0 0.0
    %445 = vmatpush1.msra.mxu0 0.0
    %446 = vmatprep.subr.mxu0 0.0
    %447 = vmatpush1.msra.mxu0 0.0
    %448 = vmatprep.subr.mxu0 0.0
    %449 = vmatpush1.msra.mxu0 0.0
    %450 = vmatprep.subr.mxu0 0.0
    %451 = vmatpush1.msra.mxu0 0.0
    %452 = vmatprep.subr.mxu0 0.0
    %453 = vmatpush1.msra.mxu0 0.0
    %454 = vmatprep.subr.mxu0 0.0
    %455 = vmatpush1.msra.mxu0 0.0
    %456 = vmatprep.subr.mxu0 0.0
    %457 = vmatpush1.msra.mxu0 0.0
    %458 = vmatprep.subr.mxu0 0.0
    %459 = vmatpush1.msra.mxu0 0.0
    %460 = vmatprep.subr.mxu0 0.0
    %461 = vmatpush1.msra.mxu0 0.0
    %462 = vmatprep.subr.mxu0 0.0
    %463 = vmatpush1.msra.mxu0 0.0
    %464 = vmatprep.subr.mxu0 0.0
    %465 = vmatpush1.msra.mxu0 0.0
    %466 = vmatprep.subr.mxu0 0.0
    %467 = vmatpush1.msra.mxu0 0.0
    %468 = vmatprep.subr.mxu0 0.0
    %469 = vmatpush1.msra.mxu0 0.0
    %470 = vmatprep.subr.mxu0 0.0
    %471 = vmatpush1.msra.mxu0 0.0
    %472 = vmatprep.subr.mxu0 0.0
    %473 = vmatpush1.msra.mxu0 0.0
    %474 = vmatprep.subr.mxu0 0.0
    %475 = vmatpush1.msra.mxu0 0.0
    %476 = vmatprep.subr.mxu0 0.0
    %477 = vmatpush1.msra.mxu0 0.0
    %478 = vmatprep.subr.mxu0 0.0
    %479 = vmatpush1.msra.mxu0 0.0
    %480 = vmatprep.subr.mxu0 0.0
    %481 = vmatpush1.msra.mxu0 0.0
    %482 = vmatprep.subr.mxu0 0.0
    %483 = vmatpush1.msra.mxu0 0.0
    %484 = vmatprep.subr.mxu0 0.0
    %485 = vmatpush1.msra.mxu0 0.0
    %486 = vmatprep.subr.mxu0 0.0
    %487 = vmatpush1.msra.mxu0 0.0
    %488 = vmatprep.subr.mxu0 0.0
    %489 = vmatpush1.msra.mxu0 0.0
    %490 = vmatprep.subr.mxu0 0.0
    %491 = vmatpush1.msra.mxu0 0.0
    %492 = vmatprep.subr.mxu0 0.0
    %493 = vmatpush1.msra.mxu0 0.0
    %494 = vmatprep.subr.mxu0 0.0
    %495 = vmatpush1.msra.mxu0 0.0
    %496 = vmatprep.subr.mxu0 0.0
    %497 = vmatpush1.msra.mxu0 0.0
    %498 = vmatprep.mubr.f32.mxu0 0.0
    %v499 = vand.u32 %v47, 4294901760
    %500 = vmatmul.mubr.f32.gmra.mrb[0].mxu0 %v499
    %v501 = vpop.f32.mrb[0].mxu0
    %v502 = vadd.f32 %v408, %v501
    %v503 = vpop.f32.mrb[0].mxu0
    %504 = vmatprep.mubr.f32.mxu0 0.0
    %v505 = vand.u32 %v50, 4294901760
    %506 = vmatmul.mubr.f32.gmra.mrb[0].mxu0 %v505
    %v507 = vpop.f32.mrb[0].mxu0
    %v508 = vadd.f32 %v416, %v507
    %v509 = vpop.f32.mrb[0].mxu0
    %510 = vdwg.mxu0
    %511 = vmatprep.subr.mxu0 0.0
    %v512 = vand.u32 %v40, 4294901760
    %513 = vmatpush1.msra.mxu0 %v512
    %514 = vmatprep.subr.mxu0 0.0
    %v515 = vand.u32 %v41, 4294901760
    %516 = vmatpush1.msra.mxu0 %v515
    %517 = vmatprep.subr.mxu0 0.0
    %v518 = vand.u32 %v42, 4294901760
    %519 = vmatpush1.msra.mxu0 %v518
    %520 = vmatprep.subr.mxu0 0.0
    %v521 = vand.u32 %v43, 4294901760
    %522 = vmatpush1.msra.mxu0 %v521
    %523 = vmatprep.subr.mxu0 0.0
    %v524 = vand.u32 %v44, 4294901760
    %525 = vmatpush1.msra.mxu0 %v524
    %526 = vmatprep.subr.mxu0 0.0
    %527 = vmatpush1.msra.mxu0 0.0
    %528 = vmatprep.subr.mxu0 0.0
    %529 = vmatpush1.msra.mxu0 0.0
    %530 = vmatprep.subr.mxu0 0.0
    %531 = vmatpush1.msra.mxu0 0.0
    %532 = vmatprep.subr.mxu0 0.0
    %533 = vmatpush1.msra.mxu0 0.0
    %534 = vmatprep.subr.mxu0 0.0
    %535 = vmatpush1.msra.mxu0 0.0
    %536 = vmatprep.subr.mxu0 0.0
    %537 = vmatpush1.msra.mxu0 0.0
    %538 = vmatprep.subr.mxu0 0.0
    %539 = vmatpush1.msra.mxu0 0.0
    %540 = vmatprep.subr.mxu0 0.0
    %541 = vmatpush1.msra.mxu0 0.0
    %542 = vmatprep.subr.mxu0 0.0
    %543 = vmatpush1.msra.mxu0 0.0
    %544 = vmatprep.subr.mxu0 0.0
    %545 = vmatpush1.msra.mxu0 0.0
    %546 = vmatprep.subr.mxu0 0.0
    %547 = vmatpush1.msra.mxu0 0.0
    %548 = vmatprep.subr.mxu0 0.0
    %549 = vmatpush1.msra.mxu0 0.0
    %550 = vmatprep.subr.mxu0 0.0
    %551 = vmatpush1.msra.mxu0 0.0
    %552 = vmatprep.subr.mxu0 0.0
    %553 = vmatpush1.msra.mxu0 0.0
    %554 = vmatprep.subr.mxu0 0.0
    %555 = vmatpush1.msra.mxu0 0.0
    %556 = vmatprep.subr.mxu0 0.0
    %557 = vmatpush1.msra.mxu0 0.0
    %558 = vmatprep.subr.mxu0 0.0
    %559 = vmatpush1.msra.mxu0 0.0
    %560 = vmatprep.subr.mxu0 0.0
    %561 = vmatpush1.msra.mxu0 0.0
    %562 = vmatprep.subr.mxu0 0.0
    %563 = vmatpush1.msra.mxu0 0.0
    %564 = vmatprep.subr.mxu0 0.0
    %565 = vmatpush1.msra.mxu0 0.0
    %566 = vmatprep.subr.mxu0 0.0
    %567 = vmatpush1.msra.mxu0 0.0
    %568 = vmatprep.subr.mxu0 0.0
    %569 = vmatpush1.msra.mxu0 0.0
    %570 = vmatprep.subr.mxu0 0.0
    %571 = vmatpush1.msra.mxu0 0.0
    %572 = vmatprep.subr.mxu0 0.0
    %573 = vmatpush1.msra.mxu0 0.0
    %574 = vmatprep.subr.mxu0 0.0
    %575 = vmatpush1.msra.mxu0 0.0
    %576 = vmatprep.subr.mxu0 0.0
    %577 = vmatpush1.msra.mxu0 0.0
    %578 = vmatprep.subr.mxu0 0.0
    %579 = vmatpush1.msra.mxu0 0.0
    %580 = vmatprep.mubr.f32.mxu0 0.0
    %v581 = vand.u32 %v47, 4294901760
    %582 = vmatmul.mubr.f32.gmra.mrb[0].mxu0 %v581
    %v583 = vpop.f32.mrb[0].mxu0
    %v584 = vadd.f32 %v502, %v583
    %v585 = vpop.f32.mrb[0].mxu0
    %586 = vmatprep.mubr.f32.mxu0 0.0
    %v587 = vand.u32 %v50, 4294901760
    %588 = vmatmul.mubr.f32.gmra.mrb[0].mxu0 %v587
    %v589 = vpop.f32.mrb[0].mxu0
    %v590 = vadd.f32 %v508, %v589
    %v591 = vpop.f32.mrb[0].mxu0
    %592 = vdwg.mxu0
    %v593 = vmul.f32 %v584, 5.656854
    %v594 = vmul.f32 %v590, 5.656854
    %vm595 = vcmask 261120
    %596 = vst.msk [vmem:[#allocation5] sm:$0xff] %vm595, %v593
    %597 = vst.msk [vmem:[#allocation5 + $0x8] sm:$0xff] %vm595, %v594
    // Predicated region
    $region14: #{tpu_custom_call.1} parent=1 // pred_check
      _
    $region15: #{tpu_custom_call.1} parent=1 // pred_check_branch
      %599 = sbr.rel (0) target = $region17
    $region16: #{tpu_custom_call.1} parent=1 // pred_region
      %s601 = ssub.s32 256, 256
      %602 = vsyncadd [#allocation4], %s601
      %s603 = sshll.u32 [#allocation5], 4
      %s604 = int_to_ptr.vmem [resolvable:$true] %s603
      %609 = dma.vmem_to_hbm [thread:$0]  %s604, 256, %s2, [#allocation4], 128, 128, 8
    $region17: #{tpu_custom_call.1} parent=1 // pred_fallthru
      _
    // Predicated region
    $region18: #{tpu_custom_call.1} parent=1 // pred_check
      _
    $region19: #{tpu_custom_call.1} parent=1 // pred_check_branch
      %611 = sbr.rel (0) target = $region21
    $region20: #{tpu_custom_call.1} parent=1 // pred_region
      %612 = dma.done [#allocation4], 256
    $region21: #{tpu_custom_call.1} parent=1 // pred_fallthru
      _
    %613 = vsyncpa [#allocation3], 1
    %614 = vsyncpa [#allocation4], 1

</llo_original>
